<compile_context>
chip_gen: v7x
topology: tpu7x:2x2x1
jax: 0.10.0
libtpu: 0.0.40
codegen_flags: <defaults>
</compile_context>

<pallas_src>
import jax
import jax.numpy as jnp
from jax.experimental import pallas as pl
from jax.experimental.pallas import tpu as pltpu

LEAK = 0.2
EPS = 1e-5


def _leaky(x):
    return jnp.where(x > 0, x, LEAK * x)


def _round_up(x, m):
    return ((x + m - 1) // m) * m


def _make_stats_kernel(HW, hw_tile):
    """Pass 1: accumulate per-sample, per-channel sum/sumsq of h2 over HW,
    finalize into mean / rstd (outputs are used as f32 accumulators)."""
    inv_hw = 1.0 / float(HW)

    def stats_kernel(x_ref, w1_ref, b1_ref, w2_ref, b2_ref, m_ref, r_ref):
        t = pl.program_id(1)

        x = x_ref[0].astype(jnp.float32)                           # (Cin, hw_tile)
        h1 = jnp.dot(w1_ref[...], x,
                     preferred_element_type=jnp.float32) + b1_ref[...]
        h1 = _leaky(h1)                                            # (ndf, hw_tile)
        h2 = jnp.dot(w2_ref[...], h1,
                     preferred_element_type=jnp.float32) + b2_ref[...]  # (ndf2, hw_tile)

        # Mask out padded HW columns so they don't pollute the statistics.
        col = t * hw_tile + jax.lax.broadcasted_iota(jnp.int32, h2.shape, 1)
        h2 = jnp.where(col < HW, h2, 0.0)

        @pl.when(t == 0)
        def _():
            m_ref[...] = jnp.zeros_like(m_ref)
            r_ref[...] = jnp.zeros_like(r_ref)

        m_ref[0] += jnp.sum(h2, axis=1, keepdims=True)             # sum
        r_ref[0] += jnp.sum(h2 * h2, axis=1, keepdims=True)        # sumsq

        @pl.when(t == pl.num_programs(1) - 1)
        def _():
            mean = m_ref[0] * inv_hw
            var = r_ref[0] * inv_hw - mean * mean                  # biased var (PyTorch IN)
            m_ref[0] = mean
            r_ref[0] = jax.lax.rsqrt(var + EPS)

    return stats_kernel


def _main_kernel(x_ref, w1_ref, b1_ref, w2_ref, b2_ref, w3_ref, b3_ref,
                 m_ref, r_ref, o_ref):
    """Pass 2: recompute conv1/conv2 per HW tile, normalize with precomputed
    per-sample stats, LeakyReLU, conv3, lane-dense store."""
    x = x_ref[0].astype(jnp.float32)                               # (Cin, hw_tile)
    h1 = jnp.dot(w1_ref[...], x,
                 preferred_element_type=jnp.float32) + b1_ref[...]
    h1 = _leaky(h1)                                                # (ndf, hw_tile)
    h2 = jnp.dot(w2_ref[...], h1,
                 preferred_element_type=jnp.float32) + b2_ref[...] # (ndf2, hw_tile)
    h2 = (h2 - m_ref[0]) * r_ref[0]                                # instance norm
    h2 = _leaky(h2)
    out = jnp.dot(w3_ref[...], h2,
                  preferred_element_type=jnp.float32) + b3_ref[...]  # (1, hw_tile)
    o_ref[0] = out.astype(o_ref.dtype)


def pixel_module_forward(x_nchw, params, *, max_hw_tile=2048):
    """x_nchw: (N, Cin, H, W) float32. Returns (N, 1, H, W)."""
    w1, b1, w2, b2, w3, b3 = params                                # w: (Cout,Cin), b: (Cout,1)
    N, Cin, H, W = x_nchw.shape
    HW = H * W
    ndf = w1.shape[0]
    ndf2 = w2.shape[0]

    # HW tile: multiple of 128 lanes, bounded so VMEM stays fixed for any image size.
    hw_tile = min(_round_up(HW, 128), _round_up(max_hw_tile, 128))
    HW_pad = _round_up(HW, hw_tile)
    T = HW_pad // hw_tile

    # NCHW -> (N, C, HW) is a free reshape (no transpose).
    x = x_nchw.reshape(N, Cin, HW)
    if HW_pad != HW:
        x = jnp.pad(x, ((0, 0), (0, 0), (0, HW_pad - HW)))

    def full(shape):
        nd = len(shape)
        return pl.BlockSpec(shape, lambda n, t, _nd=nd: (0,) * _nd)

    x_spec = pl.BlockSpec((1, Cin, hw_tile), lambda n, t: (n, 0, t))
    stat_spec = pl.BlockSpec((1, ndf2, 1), lambda n, t: (n, 0, 0))
    cparams = dict(vmem_limit_bytes=32 * 1024 * 1024)

    # ---- Pass 1: per-sample, per-channel mean / rstd of h2 over HW ----
    mean, rstd = pl.pallas_call(
        _make_stats_kernel(HW, hw_tile),
        out_shape=(jax.ShapeDtypeStruct((N, ndf2, 1), jnp.float32),
                   jax.ShapeDtypeStruct((N, ndf2, 1), jnp.float32)),
        grid_spec=pltpu.PrefetchScalarGridSpec(
            num_scalar_prefetch=0,
            grid=(N, T),
            in_specs=[x_spec,
                      full((ndf, Cin)), full((ndf, 1)),
                      full((ndf2, ndf)), full((ndf2, 1))],
            out_specs=(stat_spec, stat_spec),
        ),
        compiler_params=pltpu.CompilerParams(
            dimension_semantics=("parallel", "arbitrary"), **cparams),
    )(x, w1, b1, w2, b2)

    # ---- Pass 2: normalize + final conv, lane-dense output ----
    out = pl.pallas_call(
        _main_kernel,
        out_shape=jax.ShapeDtypeStruct((N, 1, HW_pad), x.dtype),
        grid_spec=pltpu.PrefetchScalarGridSpec(
            num_scalar_prefetch=0,
            grid=(N, T),
            in_specs=[x_spec,
                      full((ndf, Cin)), full((ndf, 1)),
                      full((ndf2, ndf)), full((ndf2, 1)),
                      full((1, ndf2)), full((1, 1)),
                      stat_spec, stat_spec],
            out_specs=pl.BlockSpec((1, 1, hw_tile), lambda n, t: (n, 0, t)),
        ),
        compiler_params=pltpu.CompilerParams(
            dimension_semantics=("parallel", "parallel"), **cparams),
    )(x, w1, b1, w2, b2, w3, b3, mean, rstd)

    # (N, 1, HW_pad) -> (N, 1, H, W) (free reshape after dropping padding)
    return out[:, :, :HW].reshape(N, 1, H, W)


def reference_forward(x_nchw, params):
    """Pure-JAX f32 reference with identical semantics."""
    w1, b1, w2, b2, w3, b3 = params
    N, Cin, H, W = x_nchw.shape
    x = x_nchw.reshape(N, Cin, H * W)
    h1 = jnp.einsum('oc,nch->noh', w1, x) + b1[None]
    h1 = jnp.where(h1 > 0, h1, LEAK * h1)
    h2 = jnp.einsum('oc,nch->noh', w2, h1) + b2[None]
    mean = jnp.mean(h2, axis=2, keepdims=True)
    var = jnp.mean((h2 - mean) ** 2, axis=2, keepdims=True)
    h2 = (h2 - mean) * jax.lax.rsqrt(var + EPS)
    h2 = jnp.where(h2 > 0, h2, LEAK * h2)
    out = jnp.einsum('oc,nch->noh', w3, h2) + b3[None]
    return out.reshape(N, 1, H, W)


def init_params(key, cin, ndf):
    """Deterministic synthetic weights. Conv 1x1 weights stored as (Cout, Cin),
    biases as (Cout, 1)."""
    k1, k2, k3, k4, k5, k6 = jax.random.split(key, 6)
    w1 = jax.random.normal(k1, (ndf, cin), jnp.float32) * 0.1
    b1 = jax.random.normal(k2, (ndf, 1), jnp.float32) * 0.1
    w2 = jax.random.normal(k3, (2 * ndf, ndf), jnp.float32) * 0.1
    b2 = jax.random.normal(k4, (2 * ndf, 1), jnp.float32) * 0.1
    w3 = jax.random.normal(k5, (1, 2 * ndf), jnp.float32) * 0.1
    b3 = jax.random.normal(k6, (1, 1), jnp.float32) * 0.1
    return (w1, b1, w2, b2, w3, b3)


if __name__ == "__main__":
    # Small shapes consistent with the module: input_nch=2, output_nch=2 -> Cin=4
    input_nch, output_nch, ndf = 2, 2, 8
    N, H, W = 2, 16, 16
    Cin = input_nch + output_nch

    key = jax.random.PRNGKey(0)
    kx, kp = jax.random.split(key)
    x = jax.random.normal(kx, (N, Cin, H, W), jnp.float32)
    params = init_params(kp, Cin, ndf)

    # Small max_hw_tile so the demo also exercises the multi-tile two-pass path
    # (HW=256 -> 2 tiles of 128).
    out = jax.block_until_ready(pixel_module_forward(x, params, max_hw_tile=128))
    ref = jax.block_until_ready(reference_forward(x, params))

    assert out.shape == (N, 1, H, W), out.shape
    assert jnp.allclose(out, ref, atol=1e-4, rtol=1e-4), (
        float(jnp.max(jnp.abs(out - ref))))
    print("KERNEL_OK")
</pallas_src>

<mosaic_0001>
module attributes {stable_mosaic.version = 11 : i64} {
  func.func @stats_kernel(%arg0: i32, %arg1: i32, %arg2: memref<1x4x128xf32, #tpu.memory_space<vmem>>, %arg3: memref<8x4xf32, #tpu.memory_space<vmem>>, %arg4: memref<8x1xf32, #tpu.memory_space<vmem>>, %arg5: memref<16x8xf32, #tpu.memory_space<vmem>>, %arg6: memref<16x1xf32, #tpu.memory_space<vmem>>, %arg7: memref<1x16x1xf32, #tpu.memory_space<vmem>>, %arg8: memref<1x16x1xf32, #tpu.memory_space<vmem>>) attributes {dimension_semantics = [#tpu.dimension_semantics<parallel>, #tpu.dimension_semantics<arbitrary>], iteration_bounds = array<i64: 2, 2>, scalar_prefetch = 0 : i64, scratch_operands = 0 : i64, tpu.core_type = #tpu.core_type<tc>, window_params = [{transform_indices = @transform_0, window_bounds = array<i64: 1, 4, 128>}, {pipeline_mode = #tpu.pipeline_mode<synchronous>, transform_indices = @transform_1, window_bounds = array<i64: 8, 4>}, {pipeline_mode = #tpu.pipeline_mode<synchronous>, transform_indices = @transform_2, window_bounds = array<i64: 8, 1>}, {pipeline_mode = #tpu.pipeline_mode<synchronous>, transform_indices = @transform_3, window_bounds = array<i64: 16, 8>}, {pipeline_mode = #tpu.pipeline_mode<synchronous>, transform_indices = @transform_4, window_bounds = array<i64: 16, 1>}, {transform_indices = @transform_5, window_bounds = array<i64: 1, 16, 1>}, {transform_indices = @transform_6, window_bounds = array<i64: 1, 16, 1>}]} {
    %c0 = arith.constant 0 : index
    %c0_0 = arith.constant 0 : index
    %c0_1 = arith.constant 0 : index
    %0 = vector.load %arg2[%c0, %c0_0, %c0_1] : memref<1x4x128xf32, #tpu.memory_space<vmem>>, vector<1x4x128xf32>
    %1 = vector.shape_cast %0 : vector<1x4x128xf32> to vector<4x128xf32>
    %c0_2 = arith.constant 0 : index
    %c0_3 = arith.constant 0 : index
    %2 = vector.load %arg3[%c0_2, %c0_3] : memref<8x4xf32, #tpu.memory_space<vmem>>, vector<8x4xf32>
    %cst = arith.constant dense<0.000000e+00> : vector<8x128xf32>
    %3 = tpu.matmul %2, %1, %cst {dimension_numbers = #tpu.dot_dimension_numbers<[1], [0], [0], [1], [0, 0, 1, 1], [], []>} : vector<8x4xf32>, vector<4x128xf32>, vector<8x128xf32> -> vector<8x128xf32>
    %c0_4 = arith.constant 0 : index
    %c0_5 = arith.constant 0 : index
    %4 = vector.load %arg4[%c0_4, %c0_5] : memref<8x1xf32, #tpu.memory_space<vmem>>, vector<8x1xf32>
    %5 = vector.broadcast %4 : vector<8x1xf32> to vector<8x128xf32>
    %6 = arith.addf %3, %5 : vector<8x128xf32>
    %cst_6 = arith.constant 0.000000e+00 : f32
    %7 = vector.broadcast %cst_6 : f32 to vector<8x128xf32>
    %8 = arith.cmpf ogt, %6, %7 : vector<8x128xf32>
    %cst_7 = arith.constant 2.000000e-01 : f32
    %9 = vector.broadcast %cst_7 : f32 to vector<8x128xf32>
    %10 = arith.mulf %9, %6 : vector<8x128xf32>
    %11 = arith.select %8, %6, %10 : vector<8x128xi1>, vector<8x128xf32>
    %c0_8 = arith.constant 0 : index
    %c0_9 = arith.constant 0 : index
    %12 = vector.load %arg5[%c0_8, %c0_9] : memref<16x8xf32, #tpu.memory_space<vmem>>, vector<16x8xf32>
    %cst_10 = arith.constant dense<0.000000e+00> : vector<16x128xf32>
    %13 = tpu.matmul %12, %11, %cst_10 {dimension_numbers = #tpu.dot_dimension_numbers<[1], [0], [0], [1], [0, 0, 1, 1], [], []>} : vector<16x8xf32>, vector<8x128xf32>, vector<16x128xf32> -> vector<16x128xf32>
    %c0_11 = arith.constant 0 : index
    %c0_12 = arith.constant 0 : index
    %14 = vector.load %arg6[%c0_11, %c0_12] : memref<16x1xf32, #tpu.memory_space<vmem>>, vector<16x1xf32>
    %15 = vector.broadcast %14 : vector<16x1xf32> to vector<16x128xf32>
    %16 = arith.addf %13, %15 : vector<16x128xf32>
    %c128_i32 = arith.constant 128 : i32
    %17 = arith.muli %arg1, %c128_i32 : i32
    %18 = tpu.iota {dimensions = array<i32: 1>} : vector<16x128xi32>
    %19 = vector.broadcast %17 : i32 to vector<16x128xi32>
    %20 = arith.addi %19, %18 : vector<16x128xi32>
    %c256_i32 = arith.constant 256 : i32
    %21 = vector.broadcast %c256_i32 : i32 to vector<16x128xi32>
    %22 = arith.cmpi slt, %20, %21 : vector<16x128xi32>
    %cst_13 = arith.constant 0.000000e+00 : f32
    %23 = vector.broadcast %cst_13 : f32 to vector<16x128xf32>
    %24 = arith.select %22, %16, %23 : vector<16x128xi1>, vector<16x128xf32>
    %c0_i32 = arith.constant 0 : i32
    %25 = arith.cmpi eq, %arg1, %c0_i32 : i32
    %26 = arith.extui %25 : i1 to i32
    %c0_i32_14 = arith.constant 0 : i32
    %27 = arith.cmpi ne, %26, %c0_i32_14 : i32
    scf.if %27 {
      %cst_30 = arith.constant 0.000000e+00 : f32
      %48 = vector.broadcast %cst_30 : f32 to vector<1x16x1xf32>
      %c0_31 = arith.constant 0 : index
      %c0_32 = arith.constant 0 : index
      %c0_33 = arith.constant 0 : index
      %49 = vector.load %arg7[%c0_31, %c0_32, %c0_33] : memref<1x16x1xf32, #tpu.memory_space<vmem>>, vector<1x16x1xf32>
      tpu.vector_store %arg7[%c0_31, %c0_32, %c0_33], %48 {strides = array<i32>} : memref<1x16x1xf32, #tpu.memory_space<vmem>>, vector<1x16x1xf32>,
      %cst_34 = arith.constant 0.000000e+00 : f32
      %50 = vector.broadcast %cst_34 : f32 to vector<1x16x1xf32>
      %c0_35 = arith.constant 0 : index
      %c0_36 = arith.constant 0 : index
      %c0_37 = arith.constant 0 : index
      %51 = vector.load %arg8[%c0_35, %c0_36, %c0_37] : memref<1x16x1xf32, #tpu.memory_space<vmem>>, vector<1x16x1xf32>
      tpu.vector_store %arg8[%c0_35, %c0_36, %c0_37], %50 {strides = array<i32>} : memref<1x16x1xf32, #tpu.memory_space<vmem>>, vector<1x16x1xf32>,
    } else {
    }
    %c0_15 = arith.constant 0 : index
    %c0_16 = arith.constant 0 : index
    %c0_17 = arith.constant 0 : index
    %28 = vector.load %arg7[%c0_15, %c0_16, %c0_17] : memref<1x16x1xf32, #tpu.memory_space<vmem>>, vector<1x16x1xf32>
    %29 = vector.shape_cast %28 : vector<1x16x1xf32> to vector<16x1xf32>
    %cst_18 = arith.constant dense<0.000000e+00> : vector<16xf32>
    %30 = vector.multi_reduction <add>, %24, %cst_18 [1] : vector<16x128xf32> to vector<16xf32>
    %31 = vector.shape_cast %30 : vector<16xf32> to vector<16x1xf32>
    %32 = arith.addf %29, %31 : vector<16x1xf32>
    %c0_19 = arith.constant 0 : index
    %c0_20 = arith.constant 0 : index
    %c0_21 = arith.constant 0 : index
    %33 = vector.load %arg7[%c0_19, %c0_20, %c0_21] : memref<1x16x1xf32, #tpu.memory_space<vmem>>, vector<1x16x1xf32>
    %34 = vector.shape_cast %33 : vector<1x16x1xf32> to vector<16x1xf32>
    %35 = vector.shape_cast %32 : vector<16x1xf32> to vector<1x16x1xf32>
    tpu.vector_store %arg7[%c0_19, %c0_20, %c0_21], %35 {strides = array<i32>} : memref<1x16x1xf32, #tpu.memory_space<vmem>>, vector<1x16x1xf32>,
    %c0_22 = arith.constant 0 : index
    %c0_23 = arith.constant 0 : index
    %c0_24 = arith.constant 0 : index
    %36 = vector.load %arg8[%c0_22, %c0_23, %c0_24] : memref<1x16x1xf32, #tpu.memory_space<vmem>>, vector<1x16x1xf32>
    %37 = vector.shape_cast %36 : vector<1x16x1xf32> to vector<16x1xf32>
    %38 = arith.mulf %24, %24 : vector<16x128xf32>
    %cst_25 = arith.constant dense<0.000000e+00> : vector<16xf32>
    %39 = vector.multi_reduction <add>, %38, %cst_25 [1] : vector<16x128xf32> to vector<16xf32>
    %40 = vector.shape_cast %39 : vector<16xf32> to vector<16x1xf32>
    %41 = arith.addf %37, %40 : vector<16x1xf32>
    %c0_26 = arith.constant 0 : index
    %c0_27 = arith.constant 0 : index
    %c0_28 = arith.constant 0 : index
    %42 = vector.load %arg8[%c0_26, %c0_27, %c0_28] : memref<1x16x1xf32, #tpu.memory_space<vmem>>, vector<1x16x1xf32>
    %43 = vector.shape_cast %42 : vector<1x16x1xf32> to vector<16x1xf32>
    %44 = vector.shape_cast %41 : vector<16x1xf32> to vector<1x16x1xf32>
    tpu.vector_store %arg8[%c0_26, %c0_27, %c0_28], %44 {strides = array<i32>} : memref<1x16x1xf32, #tpu.memory_space<vmem>>, vector<1x16x1xf32>,
    %c1_i32 = arith.constant 1 : i32
    %45 = arith.cmpi eq, %arg1, %c1_i32 : i32
    %46 = arith.extui %45 : i1 to i32
    %c0_i32_29 = arith.constant 0 : i32
    %47 = arith.cmpi ne, %46, %c0_i32_29 : i32
    scf.if %47 {
      %c0_30 = arith.constant 0 : index
      %c0_31 = arith.constant 0 : index
      %c0_32 = arith.constant 0 : index
      %48 = vector.load %arg7[%c0_30, %c0_31, %c0_32] : memref<1x16x1xf32, #tpu.memory_space<vmem>>, vector<1x16x1xf32>
      %49 = vector.shape_cast %48 : vector<1x16x1xf32> to vector<16x1xf32>
      %cst_33 = arith.constant 3.906250e-03 : f32
      %50 = vector.broadcast %cst_33 : f32 to vector<16x1xf32>
      %51 = arith.mulf %49, %50 : vector<16x1xf32>
      %c0_34 = arith.constant 0 : index
      %c0_35 = arith.constant 0 : index
      %c0_36 = arith.constant 0 : index
      %52 = vector.load %arg8[%c0_34, %c0_35, %c0_36] : memref<1x16x1xf32, #tpu.memory_space<vmem>>, vector<1x16x1xf32>
      %53 = vector.shape_cast %52 : vector<1x16x1xf32> to vector<16x1xf32>
      %cst_37 = arith.constant 3.906250e-03 : f32
      %54 = vector.broadcast %cst_37 : f32 to vector<16x1xf32>
      %55 = arith.mulf %53, %54 : vector<16x1xf32>
      %56 = arith.mulf %51, %51 : vector<16x1xf32>
      %57 = arith.subf %55, %56 : vector<16x1xf32>
      %c0_38 = arith.constant 0 : index
      %c0_39 = arith.constant 0 : index
      %c0_40 = arith.constant 0 : index
      %58 = vector.load %arg7[%c0_38, %c0_39, %c0_40] : memref<1x16x1xf32, #tpu.memory_space<vmem>>, vector<1x16x1xf32>
      %59 = vector.shape_cast %58 : vector<1x16x1xf32> to vector<16x1xf32>
      %60 = vector.shape_cast %51 : vector<16x1xf32> to vector<1x16x1xf32>
      tpu.vector_store %arg7[%c0_38, %c0_39, %c0_40], %60 {strides = array<i32>} : memref<1x16x1xf32, #tpu.memory_space<vmem>>, vector<1x16x1xf32>,
      %cst_41 = arith.constant 9.99999974E-6 : f32
      %61 = vector.broadcast %cst_41 : f32 to vector<16x1xf32>
      %62 = arith.addf %57, %61 : vector<16x1xf32>
      %63 = math.rsqrt %62 : vector<16x1xf32>
      %c0_42 = arith.constant 0 : index
      %c0_43 = arith.constant 0 : index
      %c0_44 = arith.constant 0 : index
      %64 = vector.load %arg8[%c0_42, %c0_43, %c0_44] : memref<1x16x1xf32, #tpu.memory_space<vmem>>, vector<1x16x1xf32>
      %65 = vector.shape_cast %64 : vector<1x16x1xf32> to vector<16x1xf32>
      %66 = vector.shape_cast %63 : vector<16x1xf32> to vector<1x16x1xf32>
      tpu.vector_store %arg8[%c0_42, %c0_43, %c0_44], %66 {strides = array<i32>} : memref<1x16x1xf32, #tpu.memory_space<vmem>>, vector<1x16x1xf32>,
    } else {
    }
    return
  }
  func.func @transform_0(%arg0: i32, %arg1: i32) -> (i32, i32, i32) {
    %c0_i32 = arith.constant 0 : i32
    %c0_i32_0 = arith.constant 0 : i32
    return %arg0, %c0_i32, %arg1 : i32, i32, i32
  }
  func.func @transform_1(%arg0: i32, %arg1: i32) -> (i32, i32) {
    %c0_i32 = arith.constant 0 : i32
    %c0_i32_0 = arith.constant 0 : i32
    %c0_i32_1 = arith.constant 0 : i32
    return %c0_i32, %c0_i32_0 : i32, i32
  }
  func.func @transform_2(%arg0: i32, %arg1: i32) -> (i32, i32) {
    %c0_i32 = arith.constant 0 : i32
    %c0_i32_0 = arith.constant 0 : i32
    %c0_i32_1 = arith.constant 0 : i32
    return %c0_i32, %c0_i32_0 : i32, i32
  }
  func.func @transform_3(%arg0: i32, %arg1: i32) -> (i32, i32) {
    %c0_i32 = arith.constant 0 : i32
    %c0_i32_0 = arith.constant 0 : i32
    %c0_i32_1 = arith.constant 0 : i32
    return %c0_i32, %c0_i32_0 : i32, i32
  }
  func.func @transform_4(%arg0: i32, %arg1: i32) -> (i32, i32) {
    %c0_i32 = arith.constant 0 : i32
    %c0_i32_0 = arith.constant 0 : i32
    %c0_i32_1 = arith.constant 0 : i32
    return %c0_i32, %c0_i32_0 : i32, i32
  }
  func.func @transform_5(%arg0: i32, %arg1: i32) -> (i32, i32, i32) {
    %c0_i32 = arith.constant 0 : i32
    %c0_i32_0 = arith.constant 0 : i32
    %c0_i32_1 = arith.constant 0 : i32
    return %arg0, %c0_i32, %c0_i32_0 : i32, i32, i32
  }
  func.func @transform_6(%arg0: i32, %arg1: i32) -> (i32, i32, i32) {
    %c0_i32 = arith.constant 0 : i32
    %c0_i32_0 = arith.constant 0 : i32
    %c0_i32_1 = arith.constant 0 : i32
    return %arg0, %c0_i32, %c0_i32_0 : i32, i32, i32
  }
}

</mosaic_0001>

<llo_original>
// kernel: tpu_custom_call.1
$region0: #{tpu_custom_call.1}
  #allocation0 [shape = 'u32[]', space=smem, size = 0x4, offset = 0x4, fixed_abs, tag = 'smem constant byte address 0x4 - core index']
  #allocation1 [shape = 'u32[144,128]{1,0:T(1,128)}', space=vmem, size = 0x12000, scoped, tag = 'internal scratch']
  %s0 = inlined_call_operand.vmem [shape: f32[2,4,256], index: 0, kind: input, shape index: {}]
  %s1 = inlined_call_operand.vmem [shape: f32[8,4], index: 1, kind: input, shape index: {}]
  %s2 = inlined_call_operand.vmem [shape: f32[8,1], index: 2, kind: input, shape index: {}]
  %s3 = inlined_call_operand.vmem [shape: f32[16,8], index: 3, kind: input, shape index: {}]
  %s4 = inlined_call_operand.vmem [shape: f32[16,1], index: 4, kind: input, shape index: {}]
  %s5 = inlined_call_operand.vmem [shape: f32[2,16,1], index: 5, kind: output, shape index: {0}]
  %s6 = inlined_call_operand.vmem [shape: f32[2,16,1], index: 6, kind: output, shape index: {1}]
  %7 = xla_tuple %s5, %s6
  %s8 = sld [smem:[#allocation0]]
  $region69: #{tpu_custom_call.1} parent=0
    _
  %s10 = ssub.s32 1, %s8
  %s11 = scalar_select 0, %s10, %s8
  loop: start=0, step=1, limit=6
  $region2: #{tpu_custom_call.1} parent=0 // loop_pre_header
    _
  $region3: #{tpu_custom_call.1} parent=0 // loop_header
    %s13 = sphi 0, %s17
    %p14 = scmp.ge.s32.totalorder %s13, 6
    %s20 = sphi 0, %s32
    %s21 = sphi 0, %s28
    %s22 = sphi 0, %s20
    %s23 = sphi 0, %s21
    %s24 = sphi 0, %s22
    %s25 = sphi 0, %s23
    %s37 = sphi 0, %s39
    %s40 = sphi 0, %s37
    %s41 = sphi 0, %s40
    %s57 = sphi 0, %s41
    %s61 = sphi 0, %s61
    %s63 = sphi 0, %s61
    %s64 = sphi 0, %s63
    %s78 = sphi 0, %s64
    %s82 = sphi 0, %s82
    %s84 = sphi 0, %s82
    %s85 = sphi 0, %s84
    %s99 = sphi 0, %s85
    %s103 = sphi 0, %s103
    %s105 = sphi 0, %s103
    %s106 = sphi 0, %s105
    %s120 = sphi 0, %s106
    %s124 = sphi 0, %s124
    %s126 = sphi 0, %s124
    %s127 = sphi 0, %s126
    %s141 = sphi 0, %s127
    %s147 = sphi 0, %s149
    %s150 = sphi 0, %s147
    %s151 = sphi 0, %s150
    %s167 = sphi 0, %s151
    %s173 = sphi 0, %s175
    %s176 = sphi 0, %s173
    %s177 = sphi 0, %s176
    %s193 = sphi 0, %s177
  $region4: #{tpu_custom_call.1} parent=0 // loop_header_branch
    %16 = sbr.rel (%p14) target = $region8
  $region5: #{tpu_custom_call.1} parent=0 // loop_body
    %s18 = ssub.s32 %s13, 1
    %s19 = ssub.s32 %s13, 2
    %s26 = sadd.s32 1, %s21
    %p27 = scmp.ge.s32.totalorder %s26, 2
    %s28 = scalar_select %p27, 0, %s26
    %s29 = sadd.s32 1, %s20
    %s30 = scalar_select %p27, %s29, %s20
    %p31 = scmp.ge.s32.totalorder %s30, 2
    %s32 = scalar_select %p31, 0, %s30
    %s33 = ssub.s32 %s20, %s32
    %s34 = ssub.s32 %s21, %s28
    %s35 = sor.u32 %s33, %s34
    %p36 = scmp.eq.s32.totalorder %s35, 0
    %s38 = sadd.s32 %s37, 1
    %s39 = scalar_select %p36, %s37, %s38
    %p42 = pneg %p36
    %p43 = scmp.eq.s32.totalorder %s13, 3
    %p44 = por %p42, %p43
    %p45 = scmp.ne.s32.totalorder %s37, %s40
    %p46 = scmp.eq.s32.totalorder %s13, 0
    %p47 = por %p45, %p46
    %p48 = scmp.ne.s32.totalorder %s37, %s40
    %p49 = scmp.eq.s32.totalorder %s18, 3
    %p50 = por %p48, %p49
    %p51 = scmp.ne.s32.totalorder %s40, %s41
    %p52 = scmp.eq.s32.totalorder %s18, 0
    %p53 = por %p51, %p52
    %p54 = scmp.ne.s32.totalorder %s40, %s41
    %p55 = scmp.eq.s32.totalorder %s19, 3
    %p56 = por %p54, %p55
    %p58 = scmp.ne.s32.totalorder %s41, %s57
    %p59 = scmp.eq.s32.totalorder %s19, 0
    %p60 = por %p58, %p59
    %s62 = sadd.s32 %s61, 1
    %p65 = scmp.eq.s32.totalorder %s13, 3
    %p66 = scmp.ne.s32.totalorder %s61, %s63
    %p67 = scmp.eq.s32.totalorder %s13, 0
    %p68 = por %p66, %p67
    %p69 = scmp.ne.s32.totalorder %s61, %s63
    %p70 = scmp.eq.s32.totalorder %s18, 3
    %p71 = por %p69, %p70
    %p72 = scmp.ne.s32.totalorder %s63, %s64
    %p73 = scmp.eq.s32.totalorder %s18, 0
    %p74 = por %p72, %p73
    %p75 = scmp.ne.s32.totalorder %s63, %s64
    %p76 = scmp.eq.s32.totalorder %s19, 3
    %p77 = por %p75, %p76
    %p79 = scmp.ne.s32.totalorder %s64, %s78
    %p80 = scmp.eq.s32.totalorder %s19, 0
    %p81 = por %p79, %p80
    %s83 = sadd.s32 %s82, 1
    %p86 = scmp.eq.s32.totalorder %s13, 3
    %p87 = scmp.ne.s32.totalorder %s82, %s84
    %p88 = scmp.eq.s32.totalorder %s13, 0
    %p89 = por %p87, %p88
    %p90 = scmp.ne.s32.totalorder %s82, %s84
    %p91 = scmp.eq.s32.totalorder %s18, 3
    %p92 = por %p90, %p91
    %p93 = scmp.ne.s32.totalorder %s84, %s85
    %p94 = scmp.eq.s32.totalorder %s18, 0
    %p95 = por %p93, %p94
    %p96 = scmp.ne.s32.totalorder %s84, %s85
    %p97 = scmp.eq.s32.totalorder %s19, 3
    %p98 = por %p96, %p97
    %p100 = scmp.ne.s32.totalorder %s85, %s99
    %p101 = scmp.eq.s32.totalorder %s19, 0
    %p102 = por %p100, %p101
    %s104 = sadd.s32 %s103, 1
    %p107 = scmp.eq.s32.totalorder %s13, 3
    %p108 = scmp.ne.s32.totalorder %s103, %s105
    %p109 = scmp.eq.s32.totalorder %s13, 0
    %p110 = por %p108, %p109
    %p111 = scmp.ne.s32.totalorder %s103, %s105
    %p112 = scmp.eq.s32.totalorder %s18, 3
    %p113 = por %p111, %p112
    %p114 = scmp.ne.s32.totalorder %s105, %s106
    %p115 = scmp.eq.s32.totalorder %s18, 0
    %p116 = por %p114, %p115
    %p117 = scmp.ne.s32.totalorder %s105, %s106
    %p118 = scmp.eq.s32.totalorder %s19, 3
    %p119 = por %p117, %p118
    %p121 = scmp.ne.s32.totalorder %s106, %s120
    %p122 = scmp.eq.s32.totalorder %s19, 0
    %p123 = por %p121, %p122
    %s125 = sadd.s32 %s124, 1
    %p128 = scmp.eq.s32.totalorder %s13, 3
    %p129 = scmp.ne.s32.totalorder %s124, %s126
    %p130 = scmp.eq.s32.totalorder %s13, 0
    %p131 = por %p129, %p130
    %p132 = scmp.ne.s32.totalorder %s124, %s126
    %p133 = scmp.eq.s32.totalorder %s18, 3
    %p134 = por %p132, %p133
    %p135 = scmp.ne.s32.totalorder %s126, %s127
    %p136 = scmp.eq.s32.totalorder %s18, 0
    %p137 = por %p135, %p136
    %p138 = scmp.ne.s32.totalorder %s126, %s127
    %p139 = scmp.eq.s32.totalorder %s19, 3
    %p140 = por %p138, %p139
    %p142 = scmp.ne.s32.totalorder %s127, %s141
    %p143 = scmp.eq.s32.totalorder %s19, 0
    %p144 = por %p142, %p143
    %s145 = ssub.s32 %s20, %s32
    %p146 = scmp.eq.s32.totalorder %s145, 0
    %s148 = sadd.s32 %s147, 1
    %s149 = scalar_select %p146, %s147, %s148
    %p152 = pneg %p146
    %p153 = scmp.eq.s32.totalorder %s13, 3
    %p154 = por %p152, %p153
    %p155 = scmp.ne.s32.totalorder %s147, %s150
    %p156 = scmp.eq.s32.totalorder %s13, 0
    %p157 = por %p155, %p156
    %p158 = scmp.ne.s32.totalorder %s147, %s150
    %p159 = scmp.eq.s32.totalorder %s18, 3
    %p160 = por %p158, %p159
    %p161 = scmp.ne.s32.totalorder %s150, %s151
    %p162 = scmp.eq.s32.totalorder %s18, 0
    %p163 = por %p161, %p162
    %p164 = scmp.ne.s32.totalorder %s150, %s151
    %p165 = scmp.eq.s32.totalorder %s19, 3
    %p166 = por %p164, %p165
    %p168 = scmp.ne.s32.totalorder %s151, %s167
    %p169 = scmp.eq.s32.totalorder %s19, 0
    %p170 = por %p168, %p169
    %s171 = ssub.s32 %s20, %s32
    %p172 = scmp.eq.s32.totalorder %s171, 0
    %s174 = sadd.s32 %s173, 1
    %s175 = scalar_select %p172, %s173, %s174
    %p178 = pneg %p172
    %p179 = scmp.eq.s32.totalorder %s13, 3
    %p180 = por %p178, %p179
    %p181 = scmp.ne.s32.totalorder %s173, %s176
    %p182 = scmp.eq.s32.totalorder %s13, 0
    %p183 = por %p181, %p182
    %p184 = scmp.ne.s32.totalorder %s173, %s176
    %p185 = scmp.eq.s32.totalorder %s18, 3
    %p186 = por %p184, %p185
    %p187 = scmp.ne.s32.totalorder %s176, %s177
    %p188 = scmp.eq.s32.totalorder %s18, 0
    %p189 = por %p187, %p188
    %p190 = scmp.ne.s32.totalorder %s176, %s177
    %p191 = scmp.eq.s32.totalorder %s19, 3
    %p192 = por %p190, %p191
    %p194 = scmp.ne.s32.totalorder %s177, %s193
    %p195 = scmp.eq.s32.totalorder %s19, 0
    %p196 = por %p194, %p195
    %p197 = scmp.le.s32.totalorder 1, %s13
    %p198 = scmp.lt.s32.totalorder %s13, 5
    %p199 = pnand %p197, %p198
    %p200 = pneg %p199
    // Predicated region
    $region9: #{tpu_custom_call.1} parent=5 // pred_check
      _
    $region10: #{tpu_custom_call.1} parent=5 // pred_check_branch
      %202 = sbr.rel (%p199) target = $region12
    $region11: #{tpu_custom_call.1} parent=5 // pred_region
      %s203 = ssub.s32 %s13, 1
      // Predicated region
      $region13: #{tpu_custom_call.1} parent=11 // pred_check
        %p204 = pneg %p74
      $region14: #{tpu_custom_call.1} parent=11 // pred_check_branch
        %206 = sbr.rel (%p204) target = $region16
      $region15: #{tpu_custom_call.1} parent=11 // pred_region
        _
      $region16: #{tpu_custom_call.1} parent=11 // pred_fallthru
        _
      // Predicated region
      $region17: #{tpu_custom_call.1} parent=11 // pred_check
        %p207 = pneg %p95
      $region18: #{tpu_custom_call.1} parent=11 // pred_check_branch
        %209 = sbr.rel (%p207) target = $region20
      $region19: #{tpu_custom_call.1} parent=11 // pred_region
        _
      $region20: #{tpu_custom_call.1} parent=11 // pred_fallthru
        _
      // Predicated region
      $region21: #{tpu_custom_call.1} parent=11 // pred_check
        %p210 = pneg %p116
      $region22: #{tpu_custom_call.1} parent=11 // pred_check_branch
        %212 = sbr.rel (%p210) target = $region24
      $region23: #{tpu_custom_call.1} parent=11 // pred_region
        _
      $region24: #{tpu_custom_call.1} parent=11 // pred_fallthru
        _
      // Predicated region
      $region25: #{tpu_custom_call.1} parent=11 // pred_check
        %p213 = pneg %p137
      $region26: #{tpu_custom_call.1} parent=11 // pred_check_branch
        %215 = sbr.rel (%p213) target = $region28
      $region27: #{tpu_custom_call.1} parent=11 // pred_region
        _
      $region28: #{tpu_custom_call.1} parent=11 // pred_fallthru
        _
    $region12: #{tpu_custom_call.1} parent=5 // pred_fallthru
      _
    %p216 = scmp.lt.s32.totalorder %s13, 4
    // Predicated region
    $region29: #{tpu_custom_call.1} parent=5 // pred_check
      %p217 = pneg %p216
    $region30: #{tpu_custom_call.1} parent=5 // pred_check_branch
      %219 = sbr.rel (%p217) target = $region32
    $region31: #{tpu_custom_call.1} parent=5 // pred_region
      // Predicated region
      $region33: #{tpu_custom_call.1} parent=31 // pred_check
        %p220 = pneg %p47
      $region34: #{tpu_custom_call.1} parent=31 // pred_check_branch
        %222 = sbr.rel (%p220) target = $region36
      $region35: #{tpu_custom_call.1} parent=31 // pred_region
        %p223 = scmp.lt.s32.totalorder %s20, 1
        %s224 = scalar_select %p223, %s20, 1
        %p225 = scmp.lt.s32.totalorder %s21, 1
        %s226 = scalar_select %p225, %s21, 1
        %s227 = smul.addr %s224, 2
        %s228 = sadd.s32 %s226, %s227
        %s229 = smul.addr %s228, 4
        %s230 = scalar_lea.vmem %s0, %s229
      $region36: #{tpu_custom_call.1} parent=31 // pred_fallthru
        _
    $region32: #{tpu_custom_call.1} parent=5 // pred_fallthru
      _
    %p231 = scmp.le.s32.totalorder 1, %s13
    %p232 = scmp.lt.s32.totalorder %s13, 5
    %p233 = pnand %p231, %p232
    %p234 = pneg %p233
    // Predicated region
    $region37: #{tpu_custom_call.1} parent=5 // pred_check
      _
    $region38: #{tpu_custom_call.1} parent=5 // pred_check_branch
      %236 = sbr.rel (%p233) target = $region40
    $region39: #{tpu_custom_call.1} parent=5 // pred_region
      %s237 = ssub.s32 %s13, 1
      %p238 = scmp.lt.s32.totalorder %s22, 1
      %s239 = scalar_select %p238, %s22, 1
      %p240 = scmp.lt.s32.totalorder %s23, 1
      %s241 = scalar_select %p240, %s23, 1
      %s242 = smul.addr %s239, 2
      %s243 = sadd.s32 %s241, %s242
      %s244 = smul.addr %s243, 4
      %s245 = scalar_lea.vmem %s0, %s244
      %p246 = pneg %p53
      %p247 = pneg %p50
      %p248 = pneg %p74
      %p249 = pneg %p71
      %p250 = pneg %p95
      %p251 = pneg %p92
      %p252 = pneg %p116
      %p253 = pneg %p113
      %p254 = pneg %p137
      %p255 = pneg %p134
      %p256 = pneg %p163
      %p257 = pneg %p160
      %p258 = scmp.lt.s32.totalorder %s22, 1
      %s259 = scalar_select %p258, %s22, 1
      %s260 = smul.addr %s259, 2
      %s261 = smul.addr %s260, 8
      %s262 = scalar_lea.vmem %s5, %s261
      %p263 = pneg %p189
      %p264 = pneg %p186
      %p265 = scmp.lt.s32.totalorder %s22, 1
      %s266 = scalar_select %p265, %s22, 1
      %s267 = smul.addr %s266, 2
      %s268 = smul.addr %s267, 8
      %s269 = scalar_lea.vmem %s6, %s268
      %p270 = scmp.lt.s32.totalorder %s22, 1
      %s271 = scalar_select %p270, %s22, 1
      %p272 = scmp.lt.s32.totalorder %s23, 1
      %s273 = scalar_select %p272, %s23, 1
      %s274 = smul.addr %s271, 2
      %s275 = sadd.s32 %s273, %s274
      %s276 = smul.addr %s275, 4
      %s277 = scalar_lea.vmem %s0, %s276
      %p278 = scmp.lt.s32.totalorder %s22, 1
      %s279 = scalar_select %p278, %s22, 1
      %s280 = smul.addr %s279, 2
      %s281 = smul.addr %s280, 8
      %s282 = scalar_lea.vmem %s5, %s281
      %p283 = scmp.lt.s32.totalorder %s22, 1
      %s284 = scalar_select %p283, %s22, 1
      %s285 = smul.addr %s284, 2
      %s286 = smul.addr %s285, 8
      %s287 = scalar_lea.vmem %s6, %s286
      %v288 = vld [vmem:[%s277] sm:$0xf]
      %v289 = vld [vmem:[%s1] sm:$0xff]
      %v290 = vld [vmem:[%s2] sm:$0xff]
      %292 = vset.pattern.permute.xlu0 0
      %293 = vperm.xlu0 %292, %v290
      %v294 = vpop.permute.xlu0 %293
      %vm296 = vcmask 31744
      %v298 = vsel %vm296, %v289, 0
      %vm300 = vcmask 1043456
      %v302 = vsel %vm300, %v288, 0
      %304 = vmatprep.subr.mxu0 0.0
      %305 = vmatpush1.msra.mxu0 %v302
      %306 = vmatprep.subr.mxu0 0.0
      %307 = vmatpush1.msra.mxu0 0.0
      %308 = vmatprep.subr.mxu0 0.0
      %309 = vmatpush1.msra.mxu0 0.0
      %310 = vmatprep.subr.mxu0 0.0
      %311 = vmatpush1.msra.mxu0 0.0
      %312 = vmatprep.subr.mxu0 0.0
      %313 = vmatpush1.msra.mxu0 0.0
      %314 = vmatprep.subr.mxu0 0.0
      %315 = vmatpush1.msra.mxu0 0.0
      %316 = vmatprep.subr.mxu0 0.0
      %317 = vmatpush1.msra.mxu0 0.0
      %318 = vmatprep.subr.mxu0 0.0
      %319 = vmatpush1.msra.mxu0 0.0
      %320 = vmatprep.subr.mxu0 0.0
      %321 = vmatpush1.msra.mxu0 0.0
      %322 = vmatprep.subr.mxu0 0.0
      %323 = vmatpush1.msra.mxu0 0.0
      %324 = vmatprep.subr.mxu0 0.0
      %325 = vmatpush1.msra.mxu0 0.0
      %326 = vmatprep.subr.mxu0 0.0
      %327 = vmatpush1.msra.mxu0 0.0
      %328 = vmatprep.subr.mxu0 0.0
      %329 = vmatpush1.msra.mxu0 0.0
      %330 = vmatprep.subr.mxu0 0.0
      %331 = vmatpush1.msra.mxu0 0.0
      %332 = vmatprep.subr.mxu0 0.0
      %333 = vmatpush1.msra.mxu0 0.0
      %334 = vmatprep.subr.mxu0 0.0
      %335 = vmatpush1.msra.mxu0 0.0
      %336 = vmatprep.subr.mxu0 0.0
      %337 = vmatpush1.msra.mxu0 0.0
      %338 = vmatprep.subr.mxu0 0.0
      %339 = vmatpush1.msra.mxu0 0.0
      %340 = vmatprep.subr.mxu0 0.0
      %341 = vmatpush1.msra.mxu0 0.0
      %342 = vmatprep.subr.mxu0 0.0
      %343 = vmatpush1.msra.mxu0 0.0
      %344 = vmatprep.subr.mxu0 0.0
      %345 = vmatpush1.msra.mxu0 0.0
      %346 = vmatprep.subr.mxu0 0.0
      %347 = vmatpush1.msra.mxu0 0.0
      %348 = vmatprep.subr.mxu0 0.0
      %349 = vmatpush1.msra.mxu0 0.0
      %350 = vmatprep.subr.mxu0 0.0
      %351 = vmatpush1.msra.mxu0 0.0
      %352 = vmatprep.subr.mxu0 0.0
      %353 = vmatpush1.msra.mxu0 0.0
      %354 = vmatprep.subr.mxu0 0.0
      %355 = vmatpush1.msra.mxu0 0.0
      %356 = vmatprep.subr.mxu0 0.0
      %357 = vmatpush1.msra.mxu0 0.0
      %358 = vmatprep.subr.mxu0 0.0
      %359 = vmatpush1.msra.mxu0 0.0
      %360 = vmatprep.subr.mxu0 0.0
      %361 = vmatpush1.msra.mxu0 0.0
      %362 = vmatprep.subr.mxu0 0.0
      %363 = vmatpush1.msra.mxu0 0.0
      %364 = vmatprep.subr.mxu0 0.0
      %365 = vmatpush1.msra.mxu0 0.0
      %366 = vmatprep.subr.mxu0 0.0
      %367 = vmatpush1.msra.mxu0 0.0
      %368 = vmatprep.mubr.f32.mxu0 0.0
      %369 = vmatmul.mubr.f32.gmra.mrb[0].mxu0 %v298
      %v370 = vpop.f32.mrb[0].mxu0
      %v371 = vadd.f32 %v294, %v370
      %v372 = vpop.f32.mrb[0].mxu0
      %373 = vdwg.mxu0
      %vm374 = vcmp.gt.f32.partialorder %v371, 0.0
      %v375 = vmul.f32 %v371, 0.2
      %v376 = vsel %vm374, %v371, %v375
      %v377 = vld [vmem:[%s3] sm:$0xff]
      %v378 = vld [vmem:[%s3 + $0x8] sm:$0xff]
      %v379 = vld [vmem:[%s4] sm:$0xff]
      %v380 = vld [vmem:[%s4 + $0x8] sm:$0xff]
      %382 = vset.pattern.permute.xlu0 0
      %383 = vperm.xlu0 %382, %v379
      %v384 = vpop.permute.xlu0 %383
      %387 = vset.pattern.permute.xlu0 0
      %388 = vperm.xlu0 %387, %v380
      %v389 = vpop.permute.xlu0 %388
      %vm391 = vcmask 64512
      %v393 = vsel %vm391, %v377, 0
      %v396 = vsel %vm391, %v378, 0
      %398 = vmatprep.subr.mxu0 0.0
      %399 = vmatpush1.msra.mxu0 %v376
      %400 = vmatprep.subr.mxu0 0.0
      %401 = vmatpush1.msra.mxu0 0.0
      %402 = vmatprep.subr.mxu0 0.0
      %403 = vmatpush1.msra.mxu0 0.0
      %404 = vmatprep.subr.mxu0 0.0
      %405 = vmatpush1.msra.mxu0 0.0
      %406 = vmatprep.subr.mxu0 0.0
      %407 = vmatpush1.msra.mxu0 0.0
      %408 = vmatprep.subr.mxu0 0.0
      %409 = vmatpush1.msra.mxu0 0.0
      %410 = vmatprep.subr.mxu0 0.0
      %411 = vmatpush1.msra.mxu0 0.0
      %412 = vmatprep.subr.mxu0 0.0
      %413 = vmatpush1.msra.mxu0 0.0
      %414 = vmatprep.subr.mxu0 0.0
      %415 = vmatpush1.msra.mxu0 0.0
      %416 = vmatprep.subr.mxu0 0.0
      %417 = vmatpush1.msra.mxu0 0.0
      %418 = vmatprep.subr.mxu0 0.0
      %419 = vmatpush1.msra.mxu0 0.0
      %420 = vmatprep.subr.mxu0 0.0
      %421 = vmatpush1.msra.mxu0 0.0
      %422 = vmatprep.subr.mxu0 0.0
      %423 = vmatpush1.msra.mxu0 0.0
      %424 = vmatprep.subr.mxu0 0.0
      %425 = vmatpush1.msra.mxu0 0.0
      %426 = vmatprep.subr.mxu0 0.0
      %427 = vmatpush1.msra.mxu0 0.0
      %428 = vmatprep.subr.mxu0 0.0
      %429 = vmatpush1.msra.mxu0 0.0
      %430 = vmatprep.subr.mxu0 0.0
      %431 = vmatpush1.msra.mxu0 0.0
      %432 = vmatprep.subr.mxu0 0.0
      %433 = vmatpush1.msra.mxu0 0.0
      %434 = vmatprep.subr.mxu0 0.0
      %435 = vmatpush1.msra.mxu0 0.0
      %436 = vmatprep.subr.mxu0 0.0
      %437 = vmatpush1.msra.mxu0 0.0
      %438 = vmatprep.subr.mxu0 0.0
      %439 = vmatpush1.msra.mxu0 0.0
      %440 = vmatprep.subr.mxu0 0.0
      %441 = vmatpush1.msra.mxu0 0.0
      %442 = vmatprep.subr.mxu0 0.0
      %443 = vmatpush1.msra.mxu0 0.0
      %444 = vmatprep.subr.mxu0 0.0
      %445 = vmatpush1.msra.mxu0 0.0
      %446 = vmatprep.subr.mxu0 0.0
      %447 = vmatpush1.msra.mxu0 0.0
      %448 = vmatprep.subr.mxu0 0.0
      %449 = vmatpush1.msra.mxu0 0.0
      %450 = vmatprep.subr.mxu0 0.0
      %451 = vmatpush1.msra.mxu0 0.0
      %452 = vmatprep.subr.mxu0 0.0
      %453 = vmatpush1.msra.mxu0 0.0
      %454 = vmatprep.subr.mxu0 0.0
      %455 = vmatpush1.msra.mxu0 0.0
      %456 = vmatprep.subr.mxu0 0.0
      %457 = vmatpush1.msra.mxu0 0.0
      %458 = vmatprep.subr.mxu0 0.0
      %459 = vmatpush1.msra.mxu0 0.0
      %460 = vmatprep.subr.mxu0 0.0
      %461 = vmatpush1.msra.mxu0 0.0
      %462 = vmatprep.mubr.f32.mxu0 0.0
      %463 = vmatmul.mubr.f32.gmra.mrb[0].mxu0 %v393
      %v464 = vpop.f32.mrb[0].mxu0
      %v465 = vadd.f32 %v384, %v464
      %v466 = vpop.f32.mrb[0].mxu0
      %467 = vmatprep.mubr.f32.mxu0 0.0
      %468 = vmatmul.mubr.f32.gmra.mrb[0].mxu0 %v396
      %v469 = vpop.f32.mrb[0].mxu0
      %v470 = vadd.f32 %v389, %v469
      %v471 = vpop.f32.mrb[0].mxu0
      %472 = vdwg.mxu0
      %s473 = smul.u32 %s23, 128
      %v474 = vlaneseq
      %v475 = vand.u32 %v474, 127
      %v476 = vstv %s473
      %v477 = vadd.s32 %v476, %v475
      %vm478 = vcmp.lt.s32.totalorder %v477, 256
      %v479 = vsel %vm478, %v465, 0.0
      %v480 = vsel %vm478, %v470, 0.0
      %p481 = scmp.eq.s32.totalorder %s23, 0
      // Predicated region
      $region41: #{tpu_custom_call.1} parent=39 // pred_check
        %p482 = pneg %p481
      $region42: #{tpu_custom_call.1} parent=39 // pred_check_branch
        %484 = sbr.rel (%p482) target = $region44
      $region43: #{tpu_custom_call.1} parent=39 // pred_region
        %vm485 = vcmask 7168
        %486 = vst.msk [vmem:[%s282] sm:$0xff] %vm485, 0.0
        %487 = vst.msk [vmem:[%s282 + $0x8] sm:$0xff] %vm485, 0.0
        %488 = vst.msk [vmem:[%s287] sm:$0xff] %vm485, 0.0
        %489 = vst.msk [vmem:[%s287 + $0x8] sm:$0xff] %vm485, 0.0
      $region44: #{tpu_custom_call.1} parent=39 // pred_fallthru
        _
      %v490 = vld [vmem:[%s282] sm:$0xff]
      %v491 = vld [vmem:[%s282 + $0x8] sm:$0xff]
      %492 = vadd.xlane.f32.xlu0 %v479
      %v493 = vpop.xlane.xlu0 %492
      %494 = vadd.xlane.f32.xlu0 %v480
      %v495 = vpop.xlane.xlu0 %494
      %v496 = vadd.f32 %v490, %v493
      %v497 = vadd.f32 %v491, %v495
      %vm498 = vcmask 7168
      %499 = vst.msk [vmem:[%s282] sm:$0xff] %vm498, %v496
      %500 = vst.msk [vmem:[%s282 + $0x8] sm:$0xff] %vm498, %v497
      %v501 = vld [vmem:[%s287] sm:$0xff]
      %v502 = vld [vmem:[%s287 + $0x8] sm:$0xff]
      %v503 = vmul.f32 %v479, %v479
      %v504 = vmul.f32 %v480, %v480
      %505 = vadd.xlane.f32.xlu0 %v503
      %v506 = vpop.xlane.xlu0 %505
      %507 = vadd.xlane.f32.xlu0 %v504
      %v508 = vpop.xlane.xlu0 %507
      %v509 = vadd.f32 %v501, %v506
      %v510 = vadd.f32 %v502, %v508
      %511 = vst.msk [vmem:[%s287] sm:$0xff] %vm498, %v509
      %512 = vst.msk [vmem:[%s287 + $0x8] sm:$0xff] %vm498, %v510
      %p513 = scmp.eq.s32.totalorder %s23, 1
      // Predicated region
      $region45: #{tpu_custom_call.1} parent=39 // pred_check
        %p514 = pneg %p513
      $region46: #{tpu_custom_call.1} parent=39 // pred_check_branch
        %516 = sbr.rel (%p514) target = $region48
      $region47: #{tpu_custom_call.1} parent=39 // pred_region
        %v517 = vld [vmem:[%s282] sm:$0xff]
        %v518 = vld [vmem:[%s282 + $0x8] sm:$0xff]
        %v519 = vmul.f32 %v517, 0.00390625
        %v520 = vmul.f32 %v518, 0.00390625
        %v521 = vld [vmem:[%s287] sm:$0xff]
        %v522 = vld [vmem:[%s287 + $0x8] sm:$0xff]
        %v523 = vmul.f32 %v521, 0.00390625
        %v524 = vmul.f32 %v522, 0.00390625
        %v525 = vmul.f32 %v519, %v519
        %v526 = vmul.f32 %v520, %v520
        %v527 = vsub.f32 %v523, %v525
        %v528 = vsub.f32 %v524, %v526
        %529 = vst.msk [vmem:[%s282] sm:$0xff] %vm498, %v519
        %530 = vst.msk [vmem:[%s282 + $0x8] sm:$0xff] %vm498, %v520
        %v531 = vadd.f32 %v527, 1e-05
        %v532 = vadd.f32 %v528, 1e-05
        %v533 = vrsqrt.pop %v531
        %v534 = vrsqrt.pop %v532
        %535 = vst.msk [vmem:[%s287] sm:$0xff] %vm498, %v533
        %536 = vst.msk [vmem:[%s287 + $0x8] sm:$0xff] %vm498, %v534
      $region48: #{tpu_custom_call.1} parent=39 // pred_fallthru
        _
      %p537 = scmp.lt.s32.totalorder %s22, 1
      %s538 = scalar_select %p537, %s22, 1
      %s539 = smul.addr %s538, 2
      %s540 = smul.addr %s539, 8
      %s541 = scalar_lea.vmem %s5, %s540
      %p542 = scmp.lt.s32.totalorder %s22, 1
      %s543 = scalar_select %p542, %s22, 1
      %s544 = smul.addr %s543, 2
      %s545 = smul.addr %s544, 8
      %s546 = scalar_lea.vmem %s6, %s545
      // Predicated region
      $region49: #{tpu_custom_call.1} parent=39 // pred_check
        %p547 = pneg %p160
      $region50: #{tpu_custom_call.1} parent=39 // pred_check_branch
        %549 = sbr.rel (%p547) target = $region52
      $region51: #{tpu_custom_call.1} parent=39 // pred_region
        _
      $region52: #{tpu_custom_call.1} parent=39 // pred_fallthru
        _
      // Predicated region
      $region53: #{tpu_custom_call.1} parent=39 // pred_check
        %p550 = pneg %p186
      $region54: #{tpu_custom_call.1} parent=39 // pred_check_branch
        %552 = sbr.rel (%p550) target = $region56
      $region55: #{tpu_custom_call.1} parent=39 // pred_region
        _
      $region56: #{tpu_custom_call.1} parent=39 // pred_fallthru
        _
    $region40: #{tpu_custom_call.1} parent=5 // pred_fallthru
      _
    %p553 = scmp.le.s32.totalorder 2, %s13
    // Predicated region
    $region57: #{tpu_custom_call.1} parent=5 // pred_check
      %p554 = pneg %p553
    $region58: #{tpu_custom_call.1} parent=5 // pred_check_branch
      %556 = sbr.rel (%p554) target = $region60
    $region59: #{tpu_custom_call.1} parent=5 // pred_region
      %s557 = ssub.s32 %s13, 2
      // Predicated region
      $region61: #{tpu_custom_call.1} parent=59 // pred_check
        %p558 = pneg %p166
      $region62: #{tpu_custom_call.1} parent=59 // pred_check_branch
        %560 = sbr.rel (%p558) target = $region64
      $region63: #{tpu_custom_call.1} parent=59 // pred_region
        %p561 = scmp.lt.s32.totalorder %s24, 1
        %s562 = scalar_select %p561, %s24, 1
        %s563 = smul.addr %s562, 2
        %s564 = smul.addr %s563, 8
        %s565 = scalar_lea.vmem %s5, %s564
      $region64: #{tpu_custom_call.1} parent=59 // pred_fallthru
        _
      // Predicated region
      $region65: #{tpu_custom_call.1} parent=59 // pred_check
        %p566 = pneg %p192
      $region66: #{tpu_custom_call.1} parent=59 // pred_check_branch
        %568 = sbr.rel (%p566) target = $region68
      $region67: #{tpu_custom_call.1} parent=59 // pred_region
        %p569 = scmp.lt.s32.totalorder %s24, 1
        %s570 = scalar_select %p569, %s24, 1
        %s571 = smul.addr %s570, 2
        %s572 = smul.addr %s571, 8
        %s573 = scalar_lea.vmem %s6, %s572
      $region68: #{tpu_custom_call.1} parent=59 // pred_fallthru
        _
    $region60: #{tpu_custom_call.1} parent=5 // pred_fallthru
      _
  $region6: #{tpu_custom_call.1} parent=0 // loop_footer
    %s17 = sadd.s32 1, %s13
  $region7: #{tpu_custom_call.1} parent=0 // loop_footer_branch
    %12 = sbr.rel target = $region3
  $region8: #{tpu_custom_call.1} parent=0 // loop_exit
    _

</llo_original>
